<compile_context>
chip_gen: v7x
topology: tpu7x:2x2x1
jax: 0.10.0
libtpu: 0.0.40
codegen_flags: <defaults>
</compile_context>

<pallas_src>
import functools

import jax
import jax.numpy as jnp
from jax.experimental import pallas as pl
from jax.experimental.pallas import tpu as pltpu


def _ceil_to(n, m):
    return -(-n // m) * m


# ---------------------------------------------------------------------------
# Kernels
# ---------------------------------------------------------------------------
def _bilinear_kernel_resident(x_ref, w_ref, b_ref, o_ref, *, D):
    """W fully VMEM-resident (single reduction step): no scratch, no pl.when."""
    # x_ref: [TB, 2*D]  (x1 = cols [0, D), x2 = cols [D, 2D)) in the MXU dtype
    # w_ref: [D, D]     resident weight
    # b_ref: [1]        bias scalar in SMEM
    # o_ref: [TB, 1]    output tile
    x1 = x_ref[:, :D]
    x2 = x_ref[:, D:]
    t = jnp.dot(x1, w_ref[...], preferred_element_type=jnp.float32)   # MXU, f32 acc
    o_ref[...] = (
        jnp.sum(t * x2.astype(jnp.float32), axis=-1, keepdims=True) + b_ref[0]
    )


def _bilinear_kernel_tiled(x_ref, w_ref, b_ref, o_ref, acc_ref, *, D, TN, NJ):
    """Column-tiled W: elementwise [TB, TN] f32 accumulation, one final XLU reduce."""
    j = pl.program_id(1)

    @pl.when(j == 0)
    def _init():
        acc_ref[...] = jnp.zeros_like(acc_ref)

    x1 = x_ref[:, :D]
    start = pl.multiple_of(D + j * TN, 128)       # D and TN are multiples of 128 here
    x2j = x_ref[:, pl.ds(start, TN)]
    t = jnp.dot(x1, w_ref[...], preferred_element_type=jnp.float32)   # [TB, TN] f32
    acc_ref[...] += t * x2j.astype(jnp.float32)

    @pl.when(j == NJ - 1)
    def _finalize():
        o_ref[...] = jnp.sum(acc_ref[...], axis=-1, keepdims=True) + b_ref[0]


# ---------------------------------------------------------------------------
# Tiling / budget planning
# ---------------------------------------------------------------------------
def _vmem_budget_bytes():
    try:
        cap = int(pltpu.get_tpu_info().vmem_capacity_bytes)
    except Exception:
        cap = 64 << 20                       # conservative (v7x-sized) fallback
    # ~25% headroom below physical: ~96 MiB on v5e/v6e, ~48 MiB on v7x.
    return max(32 << 20, min((cap * 3) // 4, 100 << 20))


def _plan_tiles(B, D, x_itemsize, w_itemsize, budget):
    Bp8 = _ceil_to(B, 8)

    # --- weight: keep fully resident whenever it (double-buffered) fits comfortably
    if 2 * D * D * w_itemsize <= (budget * 3) // 5 or D % 128 != 0:
        TN, NJ = D, 1
        # TODO(synk): huge D that is not a multiple of 128 is never column-tiled and
        # could exceed the VMEM budget; pad D in the wrapper if that case matters.
    else:
        TN = 0
        cand = 128
        while cand <= D // 2:
            if D % cand == 0 and 2 * D * cand * w_itemsize <= budget // 4:
                TN = cand
            cand += 128
        if TN == 0:
            TN, NJ = D, 1
        else:
            NJ = D // TN

    # --- batch tile: as large as the budget allows (deeper x pipeline when NJ > 1)
    x_bufs = 2 if NJ == 1 else 3
    if NJ == 1:
        per_row = x_bufs * 2 * D * x_itemsize + 4 * D + 64          # x bufs + f32 temp
    else:
        per_row = x_bufs * 2 * D * x_itemsize + 2 * 4 * TN + 64     # x bufs + acc + temp
    rem = max(per_row * 8, budget - 2 * D * TN * w_itemsize - (1 << 20))
    tb_cap = max(8, (rem // per_row) // 8 * 8)
    TB = min(1024, tb_cap, Bp8)
    if Bp8 >= 16:                      # >=2 batch tiles keeps both v7x TCs busy
        TB = min(TB, _ceil_to(Bp8 // 2, 8))
    TB = max(8, TB)

    # --- bound batch padding to <8 rows per tile (never a TB-sized blow-up)
    nb = -(-Bp8 // TB)
    TB = min(TB, _ceil_to(-(-Bp8 // nb), 8))
    Bp = nb * TB
    return TB, TN, NJ, nb, Bp


# ---------------------------------------------------------------------------
# Wrapper
# ---------------------------------------------------------------------------
def bilinear_module_forward(x, w, bias, *, use_bf16_matmul=True):
    """x: [B, 2, D]; w: [D, D] (= nn.Bilinear weight[0]); bias: scalar / [1]."""
    B, two, D = x.shape
    assert two == 2
    io_dtype = jnp.bfloat16 if use_bf16_matmul else jnp.float32
    x_itemsize = jnp.dtype(io_dtype).itemsize
    w_itemsize = x_itemsize

    # Stream activations and weight at the MXU operand dtype; all accumulation and
    # VPU/XLU math stays f32 inside the kernel.
    xr = x.reshape(B, 2 * D).astype(io_dtype)   # contiguous reshape + single-pass cast
    w_in = w.astype(io_dtype)
    bias1 = jnp.asarray(bias, jnp.float32).reshape(1)

    budget = _vmem_budget_bytes()
    TB, TN, NJ, nb, Bp = _plan_tiles(B, D, x_itemsize, w_itemsize, budget)
    if Bp != B:
        xr = jnp.pad(xr, ((0, Bp - B), (0, 0)))

    w_fetches = 1 if NJ == 1 else nb
    cost = pl.CostEstimate(
        flops=2 * Bp * D * D + 3 * Bp * D,
        transcendentals=0,
        bytes_accessed=Bp * 2 * D * x_itemsize
        + w_fetches * D * D * w_itemsize
        + Bp * 4,
    )

    def build(use_buffered):
        def bspec(shape, index_map, buffers):
            if buffers is None or not use_buffered:
                return pl.BlockSpec(shape, index_map)
            return pl.BlockSpec(shape, index_map, pipeline_mode=pl.Buffered(buffers))

        if NJ == 1:
            kernel = functools.partial(_bilinear_kernel_resident, D=D)
            grid = (nb,)
            # Single-buffer the once-fetched resident weight (only worth it when big).
            w_bufs = 1 if D * D * w_itemsize >= (1 << 20) else None
            in_specs = [
                bspec((TB, 2 * D), lambda i: (i, 0), None),
                bspec((D, D), lambda i: (0, 0), w_bufs),
                pl.BlockSpec(memory_space=pltpu.MemorySpace.SMEM),
            ]
            out_specs = pl.BlockSpec((TB, 1), lambda i: (i, 0))
            scratch = []
            semantics = ("parallel",)
        else:
            kernel = functools.partial(_bilinear_kernel_tiled, D=D, TN=TN, NJ=NJ)
            grid = (nb, NJ)
            in_specs = [
                # x's block only changes at batch-tile boundaries: deepen its pipeline.
                bspec((TB, 2 * D), lambda i, j: (i, 0), 3),
                bspec((D, TN), lambda i, j: (0, j), None),
                pl.BlockSpec(memory_space=pltpu.MemorySpace.SMEM),
            ]
            out_specs = pl.BlockSpec((TB, 1), lambda i, j: (i, 0))
            scratch = [pltpu.VMEM((TB, TN), jnp.float32)]
            semantics = ("parallel", "arbitrary")

        return pl.pallas_call(
            kernel,
            out_shape=jax.ShapeDtypeStruct((Bp, 1), jnp.float32),
            grid_spec=pltpu.PrefetchScalarGridSpec(
                num_scalar_prefetch=0,
                grid=grid,
                in_specs=in_specs,
                out_specs=out_specs,
                scratch_shapes=scratch,
            ),
            compiler_params=pltpu.CompilerParams(
                dimension_semantics=semantics,
                vmem_limit_bytes=int(budget),
            ),
            cost_estimate=cost,
        )

    try:
        out = build(use_buffered=True)(xr, w_in, bias1)
    except Exception:
        # pl.Buffered pipeline_mode unsupported on this JAX/Mosaic: default buffering.
        out = build(use_buffered=False)(xr, w_in, bias1)
    return out[:B]


if __name__ == "__main__":
    key = jax.random.PRNGKey(0)
    B, D = 8, 32  # small shapes consistent with forward: x is [B, 2, D], dim = D

    kx, kw, kb = jax.random.split(key, 3)
    x = jax.random.normal(kx, (B, 2, D), dtype=jnp.float32)

    # Parameter shapes from nn.Bilinear(dim, dim, 1): weight [1, D, D] (squeezed), bias [1].
    bound = 1.0 / jnp.sqrt(jnp.float32(D))
    w = jax.random.uniform(kw, (D, D), jnp.float32, -bound, bound)
    bias = jax.random.uniform(kb, (1,), jnp.float32, -bound, bound)

    def ref_fn(xx, ww, bb):
        return (
            jnp.einsum(
                "bi,ij,bj->b", xx[:, 0, :], ww, xx[:, 1, :], precision="highest"
            )[:, None]
            + bb[0]
        )

    # f32 MXU path
    out_f32 = jax.block_until_ready(
        bilinear_module_forward(x, w, bias, use_bf16_matmul=False)
    )
    assert out_f32.shape == (B, 1)
    assert jnp.allclose(out_f32, ref_fn(x, w, bias), atol=2e-2, rtol=2e-2)

    # bf16 streaming path (reference uses bf16-rounded x and W; f32 accumulation)
    out_bf16 = jax.block_until_ready(
        bilinear_module_forward(x, w, bias, use_bf16_matmul=True)
    )
    x_bf = x.astype(jnp.bfloat16).astype(jnp.float32)
    ref_bf = ref_fn(x_bf, w.astype(jnp.bfloat16).astype(jnp.float32), bias)
    assert jnp.allclose(out_bf16, ref_bf, atol=2e-2, rtol=2e-2)

    # Non-multiple-of-8 batch exercises the (bounded) padding path and a 2-tile grid.
    x_pad = jax.random.normal(jax.random.PRNGKey(1), (10, 2, D), dtype=jnp.float32)
    out_pad = jax.block_until_ready(
        bilinear_module_forward(x_pad, w, bias, use_bf16_matmul=False)
    )
    ref_pad = ref_fn(x_pad, w, bias)
    assert out_pad.shape == (10, 1)
    assert jnp.allclose(out_pad, ref_pad, atol=2e-2, rtol=2e-2)

    print("KERNEL_OK")
</pallas_src>

<mosaic_0001>
module attributes {stable_mosaic.version = 11 : i64} {
  func.func @_bilinear_kernel_resident(%arg0: i32, %arg1: memref<8x64xf32, #tpu.memory_space<vmem>>, %arg2: memref<32x32xf32, #tpu.memory_space<vmem>>, %arg3: memref<1xf32, #tpu.memory_space<smem>>, %arg4: memref<8x1xf32, #tpu.memory_space<vmem>>) attributes {dimension_semantics = [#tpu.dimension_semantics<parallel>], iteration_bounds = array<i64: 1>, scalar_prefetch = 0 : i64, scratch_operands = 0 : i64, tpu.core_type = #tpu.core_type<tc>, window_params = [{transform_indices = @transform_0, window_bounds = array<i64: 8, 64>}, {pipeline_mode = #tpu.pipeline_mode<synchronous>, transform_indices = @transform_1, window_bounds = array<i64: 32, 32>}, {transform_indices = @transform_2, window_bounds = array<i64: 1>}, {transform_indices = @transform_3, window_bounds = array<i64: 8, 1>}]} {
    %c0 = arith.constant 0 : index
    %c0_0 = arith.constant 0 : index
    %0 = vector.load %arg1[%c0, %c0_0] : memref<8x64xf32, #tpu.memory_space<vmem>>, vector<8x32xf32>
    %c0_1 = arith.constant 0 : index
    %c32 = arith.constant 32 : index
    %1 = vector.load %arg1[%c0_1, %c32] : memref<8x64xf32, #tpu.memory_space<vmem>>, vector<8x32xf32>
    %c0_2 = arith.constant 0 : index
    %c0_3 = arith.constant 0 : index
    %2 = vector.load %arg2[%c0_2, %c0_3] : memref<32x32xf32, #tpu.memory_space<vmem>>, vector<32x32xf32>
    %cst = arith.constant dense<0.000000e+00> : vector<8x32xf32>
    %3 = tpu.matmul %0, %2, %cst {dimension_numbers = #tpu.dot_dimension_numbers<[1], [0], [0], [1], [0, 0, 1, 1], [], []>} : vector<8x32xf32>, vector<32x32xf32>, vector<8x32xf32> -> vector<8x32xf32>
    %4 = arith.mulf %3, %1 : vector<8x32xf32>
    %cst_4 = arith.constant dense<0.000000e+00> : vector<8xf32>
    %5 = vector.multi_reduction <add>, %4, %cst_4 [1] : vector<8x32xf32> to vector<8xf32>
    %6 = vector.shape_cast %5 : vector<8xf32> to vector<8x1xf32>
    %c0_5 = arith.constant 0 : index
    %7 = memref.load %arg3[%c0_5] : memref<1xf32, #tpu.memory_space<smem>>
    %8 = vector.broadcast %7 : f32 to vector<8x1xf32>
    %9 = arith.addf %6, %8 : vector<8x1xf32>
    %c0_6 = arith.constant 0 : index
    %c0_7 = arith.constant 0 : index
    %10 = vector.load %arg4[%c0_6, %c0_7] : memref<8x1xf32, #tpu.memory_space<vmem>>, vector<8x1xf32>
    tpu.vector_store %arg4[%c0_6, %c0_7], %9 {strides = array<i32>} : memref<8x1xf32, #tpu.memory_space<vmem>>, vector<8x1xf32>,
    return
  }
  func.func @transform_0(%arg0: i32) -> (i32, i32) {
    %c0_i32 = arith.constant 0 : i32
    %c0_i32_0 = arith.constant 0 : i32
    return %arg0, %c0_i32 : i32, i32
  }
  func.func @transform_1(%arg0: i32) -> (i32, i32) {
    %c0_i32 = arith.constant 0 : i32
    %c0_i32_0 = arith.constant 0 : i32
    %c0_i32_1 = arith.constant 0 : i32
    return %c0_i32, %c0_i32_0 : i32, i32
  }
  func.func @transform_2(%arg0: i32) -> i32 {
    %c0_i32 = arith.constant 0 : i32
    %c0_i32_0 = arith.constant 0 : i32
    return %c0_i32 : i32
  }
  func.func @transform_3(%arg0: i32) -> (i32, i32) {
    %c0_i32 = arith.constant 0 : i32
    %c0_i32_0 = arith.constant 0 : i32
    return %arg0, %c0_i32 : i32, i32
  }
}

module attributes {stable_mosaic.version = 11 : i64} {
  func.func @_bilinear_kernel_resident(%arg0: i32, %arg1: memref<8x64xf32, #tpu.memory_space<vmem>>, %arg2: memref<32x32xf32, #tpu.memory_space<vmem>>, %arg3: memref<1xf32, #tpu.memory_space<smem>>, %arg4: memref<8x1xf32, #tpu.memory_space<vmem>>) attributes {dimension_semantics = [#tpu.dimension_semantics<parallel>], iteration_bounds = array<i64: 1>, scalar_prefetch = 0 : i64, scratch_operands = 0 : i64, tpu.core_type = #tpu.core_type<tc>, window_params = [{transform_indices = @transform_0, window_bounds = array<i64: 8, 64>}, {pipeline_mode = #tpu.pipeline_mode<synchronous>, transform_indices = @transform_1, window_bounds = array<i64: 32, 32>}, {transform_indices = @transform_2, window_bounds = array<i64: 1>}, {transform_indices = @transform_3, window_bounds = array<i64: 8, 1>}]} {
    %c0 = arith.constant 0 : index
    %c0_0 = arith.constant 0 : index
    %0 = vector.load %arg1[%c0, %c0_0] : memref<8x64xf32, #tpu.memory_space<vmem>>, vector<8x32xf32>
    %c0_1 = arith.constant 0 : index
    %c32 = arith.constant 32 : index
    %1 = vector.load %arg1[%c0_1, %c32] : memref<8x64xf32, #tpu.memory_space<vmem>>, vector<8x32xf32>
    %c0_2 = arith.constant 0 : index
    %c0_3 = arith.constant 0 : index
    %2 = vector.load %arg2[%c0_2, %c0_3] : memref<32x32xf32, #tpu.memory_space<vmem>>, vector<32x32xf32>
    %cst = arith.constant dense<0.000000e+00> : vector<8x32xf32>
    %3 = tpu.matmul %0, %2, %cst {dimension_numbers = #tpu.dot_dimension_numbers<[1], [0], [0], [1], [0, 0, 1, 1], [], []>} : vector<8x32xf32>, vector<32x32xf32>, vector<8x32xf32> -> vector<8x32xf32>
    %4 = arith.mulf %3, %1 : vector<8x32xf32>
    %cst_4 = arith.constant dense<0.000000e+00> : vector<8xf32>
    %5 = vector.multi_reduction <add>, %4, %cst_4 [1] : vector<8x32xf32> to vector<8xf32>
    %6 = vector.shape_cast %5 : vector<8xf32> to vector<8x1xf32>
    %c0_5 = arith.constant 0 : index
    %7 = memref.load %arg3[%c0_5] : memref<1xf32, #tpu.memory_space<smem>>
    %8 = vector.broadcast %7 : f32 to vector<8x1xf32>
    %9 = arith.addf %6, %8 : vector<8x1xf32>
    %c0_6 = arith.constant 0 : index
    %c0_7 = arith.constant 0 : index
    %10 = vector.load %arg4[%c0_6, %c0_7] : memref<8x1xf32, #tpu.memory_space<vmem>>, vector<8x1xf32>
    tpu.vector_store %arg4[%c0_6, %c0_7], %9 {strides = array<i32>} : memref<8x1xf32, #tpu.memory_space<vmem>>, vector<8x1xf32>,
    return
  }
  func.func @transform_0(%arg0: i32) -> (i32, i32) {
    %c0_i32 = arith.constant 0 : i32
    %c0_i32_0 = arith.constant 0 : i32
    return %arg0, %c0_i32 : i32, i32
  }
  func.func @transform_1(%arg0: i32) -> (i32, i32) {
    %c0_i32 = arith.constant 0 : i32
    %c0_i32_0 = arith.constant 0 : i32
    %c0_i32_1 = arith.constant 0 : i32
    return %c0_i32, %c0_i32_0 : i32, i32
  }
  func.func @transform_2(%arg0: i32) -> i32 {
    %c0_i32 = arith.constant 0 : i32
    %c0_i32_0 = arith.constant 0 : i32
    return %c0_i32 : i32
  }
  func.func @transform_3(%arg0: i32) -> (i32, i32) {
    %c0_i32 = arith.constant 0 : i32
    %c0_i32_0 = arith.constant 0 : i32
    return %arg0, %c0_i32 : i32, i32
  }
}

</mosaic_0001>

<llo_original>
// kernel: tpu_custom_call.1
$region0: #{tpu_custom_call.1}
  #allocation0 [shape = 'u32[]', space=smem, size = 0x4, offset = 0x4, fixed_abs, tag = 'smem constant byte address 0x4 - core index']
  #allocation1 [shape = 'u32[144,128]{1,0:T(1,128)}', space=vmem, size = 0x12000, scoped, tag = 'internal scratch']
  #allocation2 [shape = 'f32[1]{0:T(128)S(6)}', space=smem, size = 0x200, scoped, tag = 'scoped memory for tpu_custom_call.1']
  %s0 = inlined_call_operand.hbm [shape: f32[8,64], index: 0, kind: input, shape index: {}]
  %s1 = inlined_call_operand.hbm [shape: f32[32,32], index: 1, kind: input, shape index: {}]
  %s2 = inlined_call_operand.<no memory space> [shape: f32[1], index: 2, kind: input, shape index: {}]
  %s3 = inlined_call_operand.vmem [shape: f32[8,1], index: 3, kind: output, shape index: {}]
  %s4 = sld [smem:[#allocation0]]
  $region30: #{tpu_custom_call.1} parent=0
    _
  %s6 = ssub.s32 1, %s4
  %s7 = scalar_select 0, %s6, %s4
  %8 = sst [smem:[#allocation2]] %s2
  $region1: #{tpu_custom_call.1} parent=0
    #allocation3 [shape = 'u8[4096]{0}', space=vmem, size = 0x1000, scoped, tag = 'input window, operand 0, single buffered']
    #allocation4 [shape = 's32[1]{0}', space=sflag, size = 0x4, scoped, tag = 'scoped memory for tpu_custom_call.1']
    #allocation5 [shape = 'u8[16384]{0}', space=vmem, size = 0x4000, scoped, tag = 'input window, operand 1, single buffered']
    #allocation6 [shape = 's32[1]{0}', space=sflag, size = 0x4, scoped, tag = 'scoped memory for tpu_custom_call.1']
    %9 = vsyncpa [#allocation4], 0
    %10 = vsyncpa [#allocation6], 0
    // Predicated region
    $region2: #{tpu_custom_call.1} parent=1 // pred_check
      _
    $region3: #{tpu_custom_call.1} parent=1 // pred_check_branch
      %12 = sbr.rel (0) target = $region5
    $region4: #{tpu_custom_call.1} parent=1 // pred_region
      %s14 = ssub.s32 128, 128
      %15 = vsyncadd [#allocation4], %s14
      %s17 = sshll.u32 [#allocation3], 4
      %s18 = int_to_ptr.vmem [resolvable:$true] %s17
      %20 = dma.hbm_to_vmem [thread:$0]  %s0, 128, %s18, [#allocation4]
    $region5: #{tpu_custom_call.1} parent=1 // pred_fallthru
      _
    // Predicated region
    $region6: #{tpu_custom_call.1} parent=1 // pred_check
      _
    $region7: #{tpu_custom_call.1} parent=1 // pred_check_branch
      %22 = sbr.rel (0) target = $region9
    $region8: #{tpu_custom_call.1} parent=1 // pred_region
      %s24 = ssub.s32 512, 512
      %25 = vsyncadd [#allocation6], %s24
      %s26 = sshll.u32 [#allocation5], 4
      %s27 = int_to_ptr.vmem [resolvable:$true] %s26
      %32 = dma.hbm_to_vmem [thread:$0]  %s1, 512, %s27, [#allocation6], 128, 128, 8
    $region9: #{tpu_custom_call.1} parent=1 // pred_fallthru
      _
    // Predicated region
    $region10: #{tpu_custom_call.1} parent=1 // pred_check
      _
    $region11: #{tpu_custom_call.1} parent=1 // pred_check_branch
      %34 = sbr.rel (0) target = $region13
    $region12: #{tpu_custom_call.1} parent=1 // pred_region
      _
    $region13: #{tpu_custom_call.1} parent=1 // pred_fallthru
      _
    // Predicated region
    $region14: #{tpu_custom_call.1} parent=1 // pred_check
      _
    $region15: #{tpu_custom_call.1} parent=1 // pred_check_branch
      %36 = sbr.rel (0) target = $region17
    $region16: #{tpu_custom_call.1} parent=1 // pred_region
      %37 = dma.done [#allocation4], 128
    $region17: #{tpu_custom_call.1} parent=1 // pred_fallthru
      _
    // Predicated region
    $region18: #{tpu_custom_call.1} parent=1 // pred_check
      _
    $region19: #{tpu_custom_call.1} parent=1 // pred_check_branch
      %39 = sbr.rel (0) target = $region21
    $region20: #{tpu_custom_call.1} parent=1 // pred_region
      %40 = dma.done [#allocation6], 512
    $region21: #{tpu_custom_call.1} parent=1 // pred_fallthru
      _
    %v41 = vld [vmem:[#allocation3] sm:$0xff]
    %v42 = vld [vmem:[#allocation5] sm:$0xff]
    %v43 = vld [vmem:[#allocation5 + $0x8] sm:$0xff]
    %v44 = vld [vmem:[#allocation5 + $0x10] sm:$0xff]
    %v45 = vld [vmem:[#allocation5 + $0x18] sm:$0xff]
    %vm46 = vcmask 261120
    %v48 = vsel %vm46, %v41, 0
    %50 = vmatprep.subr.mxu0 0.0
    %51 = vmatpush1.msra.mxu0 %v42
    %52 = vmatprep.subr.mxu0 0.0
    %53 = vmatpush1.msra.mxu0 %v43
    %54 = vmatprep.subr.mxu0 0.0
    %55 = vmatpush1.msra.mxu0 %v44
    %56 = vmatprep.subr.mxu0 0.0
    %57 = vmatpush1.msra.mxu0 %v45
    %58 = vmatprep.subr.mxu0 0.0
    %59 = vmatpush1.msra.mxu0 0.0
    %60 = vmatprep.subr.mxu0 0.0
    %61 = vmatpush1.msra.mxu0 0.0
    %62 = vmatprep.subr.mxu0 0.0
    %63 = vmatpush1.msra.mxu0 0.0
    %64 = vmatprep.subr.mxu0 0.0
    %65 = vmatpush1.msra.mxu0 0.0
    %66 = vmatprep.subr.mxu0 0.0
    %67 = vmatpush1.msra.mxu0 0.0
    %68 = vmatprep.subr.mxu0 0.0
    %69 = vmatpush1.msra.mxu0 0.0
    %70 = vmatprep.subr.mxu0 0.0
    %71 = vmatpush1.msra.mxu0 0.0
    %72 = vmatprep.subr.mxu0 0.0
    %73 = vmatpush1.msra.mxu0 0.0
    %74 = vmatprep.subr.mxu0 0.0
    %75 = vmatpush1.msra.mxu0 0.0
    %76 = vmatprep.subr.mxu0 0.0
    %77 = vmatpush1.msra.mxu0 0.0
    %78 = vmatprep.subr.mxu0 0.0
    %79 = vmatpush1.msra.mxu0 0.0
    %80 = vmatprep.subr.mxu0 0.0
    %81 = vmatpush1.msra.mxu0 0.0
    %82 = vmatprep.subr.mxu0 0.0
    %83 = vmatpush1.msra.mxu0 0.0
    %84 = vmatprep.subr.mxu0 0.0
    %85 = vmatpush1.msra.mxu0 0.0
    %86 = vmatprep.subr.mxu0 0.0
    %87 = vmatpush1.msra.mxu0 0.0
    %88 = vmatprep.subr.mxu0 0.0
    %89 = vmatpush1.msra.mxu0 0.0
    %90 = vmatprep.subr.mxu0 0.0
    %91 = vmatpush1.msra.mxu0 0.0
    %92 = vmatprep.subr.mxu0 0.0
    %93 = vmatpush1.msra.mxu0 0.0
    %94 = vmatprep.subr.mxu0 0.0
    %95 = vmatpush1.msra.mxu0 0.0
    %96 = vmatprep.subr.mxu0 0.0
    %97 = vmatpush1.msra.mxu0 0.0
    %98 = vmatprep.subr.mxu0 0.0
    %99 = vmatpush1.msra.mxu0 0.0
    %100 = vmatprep.subr.mxu0 0.0
    %101 = vmatpush1.msra.mxu0 0.0
    %102 = vmatprep.subr.mxu0 0.0
    %103 = vmatpush1.msra.mxu0 0.0
    %104 = vmatprep.subr.mxu0 0.0
    %105 = vmatpush1.msra.mxu0 0.0
    %106 = vmatprep.subr.mxu0 0.0
    %107 = vmatpush1.msra.mxu0 0.0
    %108 = vmatprep.subr.mxu0 0.0
    %109 = vmatpush1.msra.mxu0 0.0
    %110 = vmatprep.subr.mxu0 0.0
    %111 = vmatpush1.msra.mxu0 0.0
    %112 = vmatprep.subr.mxu0 0.0
    %113 = vmatpush1.msra.mxu0 0.0
    %114 = vmatprep.mubr.f32.mxu0 0.0
    %115 = vmatmul.mubr.f32.gmra.mrb[0].mxu0 %v48
    %v116 = vpop.f32.mrb[0].mxu0
    %v117 = vadd.f32 0.0, %v116
    %v118 = vpop.f32.mrb[0].mxu0
    %119 = vdwg.mxu0
    %120 = vrot.lane.b32.xlu0 %v41, 96
    %v121 = vpop.permute.xlu0 %120
    %v123 = vmul.f32 %v117, %v121
    %v124 = vsel %vm46, %v123, 0.0
    %125 = vadd.xlane.f32.xlu0 %v124
    %v126 = vpop.xlane.xlu0 %125
    %s127 = sld [smem:[#allocation2]]
    %v128 = vstv %s127
    %v129 = vadd.f32 %v126, %v128
    %vm130 = vcmask 7168
    %131 = vst.msk [vmem:[%s3] sm:$0xff] %vm130, %v129
    // Predicated region
    $region22: #{tpu_custom_call.1} parent=1 // pred_check
      _
    $region23: #{tpu_custom_call.1} parent=1 // pred_check_branch
      %133 = sbr.rel (0) target = $region25
    $region24: #{tpu_custom_call.1} parent=1 // pred_region
      _
    $region25: #{tpu_custom_call.1} parent=1 // pred_fallthru
      _
    // Predicated region
    $region26: #{tpu_custom_call.1} parent=1 // pred_check
      _
    $region27: #{tpu_custom_call.1} parent=1 // pred_check_branch
      %135 = sbr.rel (0) target = $region29
    $region28: #{tpu_custom_call.1} parent=1 // pred_region
      _
    $region29: #{tpu_custom_call.1} parent=1 // pred_fallthru
      _
    %136 = vsyncpa [#allocation4], 1
    %137 = vsyncpa [#allocation6], 1

// kernel: tpu_custom_call.1
$region0: #{tpu_custom_call.1}
  #allocation0 [shape = 'u32[]', space=smem, size = 0x4, offset = 0x4, fixed_abs, tag = 'smem constant byte address 0x4 - core index']
  #allocation1 [shape = 'u32[144,128]{1,0:T(1,128)}', space=vmem, size = 0x12000, scoped, tag = 'internal scratch']
  #allocation2 [shape = 'f32[1]{0:T(128)S(6)}', space=smem, size = 0x200, scoped, tag = 'scoped memory for tpu_custom_call.1']
  %s0 = inlined_call_operand.hbm [shape: f32[8,64], index: 0, kind: input, shape index: {}]
  %s1 = inlined_call_operand.hbm [shape: f32[32,32], index: 1, kind: input, shape index: {}]
  %s2 = inlined_call_operand.<no memory space> [shape: f32[1], index: 2, kind: input, shape index: {}]
  %s3 = inlined_call_operand.vmem [shape: f32[8,1], index: 3, kind: output, shape index: {}]
  %s4 = sld [smem:[#allocation0]]
  $region30: #{tpu_custom_call.1} parent=0
    _
  %s6 = ssub.s32 1, %s4
  %s7 = scalar_select 0, %s6, %s4
  %8 = sst [smem:[#allocation2]] %s2
  $region1: #{tpu_custom_call.1} parent=0
    #allocation3 [shape = 'u8[4096]{0}', space=vmem, size = 0x1000, scoped, tag = 'input window, operand 0, single buffered']
    #allocation4 [shape = 's32[1]{0}', space=sflag, size = 0x4, scoped, tag = 'scoped memory for tpu_custom_call.1']
    #allocation5 [shape = 'u8[16384]{0}', space=vmem, size = 0x4000, scoped, tag = 'input window, operand 1, single buffered']
    #allocation6 [shape = 's32[1]{0}', space=sflag, size = 0x4, scoped, tag = 'scoped memory for tpu_custom_call.1']
    %9 = vsyncpa [#allocation4], 0
    %10 = vsyncpa [#allocation6], 0
    // Predicated region
    $region2: #{tpu_custom_call.1} parent=1 // pred_check
      _
    $region3: #{tpu_custom_call.1} parent=1 // pred_check_branch
      %12 = sbr.rel (0) target = $region5
    $region4: #{tpu_custom_call.1} parent=1 // pred_region
      %s14 = ssub.s32 128, 128
      %15 = vsyncadd [#allocation4], %s14
      %s17 = sshll.u32 [#allocation3], 4
      %s18 = int_to_ptr.vmem [resolvable:$true] %s17
      %20 = dma.hbm_to_vmem [thread:$0]  %s0, 128, %s18, [#allocation4]
    $region5: #{tpu_custom_call.1} parent=1 // pred_fallthru
      _
    // Predicated region
    $region6: #{tpu_custom_call.1} parent=1 // pred_check
      _
    $region7: #{tpu_custom_call.1} parent=1 // pred_check_branch
      %22 = sbr.rel (0) target = $region9
    $region8: #{tpu_custom_call.1} parent=1 // pred_region
      %s24 = ssub.s32 512, 512
      %25 = vsyncadd [#allocation6], %s24
      %s26 = sshll.u32 [#allocation5], 4
      %s27 = int_to_ptr.vmem [resolvable:$true] %s26
      %32 = dma.hbm_to_vmem [thread:$0]  %s1, 512, %s27, [#allocation6], 128, 128, 8
    $region9: #{tpu_custom_call.1} parent=1 // pred_fallthru
      _
    // Predicated region
    $region10: #{tpu_custom_call.1} parent=1 // pred_check
      _
    $region11: #{tpu_custom_call.1} parent=1 // pred_check_branch
      %34 = sbr.rel (0) target = $region13
    $region12: #{tpu_custom_call.1} parent=1 // pred_region
      _
    $region13: #{tpu_custom_call.1} parent=1 // pred_fallthru
      _
    // Predicated region
    $region14: #{tpu_custom_call.1} parent=1 // pred_check
      _
    $region15: #{tpu_custom_call.1} parent=1 // pred_check_branch
      %36 = sbr.rel (0) target = $region17
    $region16: #{tpu_custom_call.1} parent=1 // pred_region
      %37 = dma.done [#allocation4], 128
    $region17: #{tpu_custom_call.1} parent=1 // pred_fallthru
      _
    // Predicated region
    $region18: #{tpu_custom_call.1} parent=1 // pred_check
      _
    $region19: #{tpu_custom_call.1} parent=1 // pred_check_branch
      %39 = sbr.rel (0) target = $region21
    $region20: #{tpu_custom_call.1} parent=1 // pred_region
      %40 = dma.done [#allocation6], 512
    $region21: #{tpu_custom_call.1} parent=1 // pred_fallthru
      _
    %v41 = vld [vmem:[#allocation3] sm:$0xff]
    %v42 = vld [vmem:[#allocation5] sm:$0xff]
    %v43 = vld [vmem:[#allocation5 + $0x8] sm:$0xff]
    %v44 = vld [vmem:[#allocation5 + $0x10] sm:$0xff]
    %v45 = vld [vmem:[#allocation5 + $0x18] sm:$0xff]
    %vm46 = vcmask 261120
    %v48 = vsel %vm46, %v41, 0
    %50 = vmatprep.subr.mxu0 0.0
    %51 = vmatpush1.msra.mxu0 %v42
    %52 = vmatprep.subr.mxu0 0.0
    %53 = vmatpush1.msra.mxu0 %v43
    %54 = vmatprep.subr.mxu0 0.0
    %55 = vmatpush1.msra.mxu0 %v44
    %56 = vmatprep.subr.mxu0 0.0
    %57 = vmatpush1.msra.mxu0 %v45
    %58 = vmatprep.subr.mxu0 0.0
    %59 = vmatpush1.msra.mxu0 0.0
    %60 = vmatprep.subr.mxu0 0.0
    %61 = vmatpush1.msra.mxu0 0.0
    %62 = vmatprep.subr.mxu0 0.0
    %63 = vmatpush1.msra.mxu0 0.0
    %64 = vmatprep.subr.mxu0 0.0
    %65 = vmatpush1.msra.mxu0 0.0
    %66 = vmatprep.subr.mxu0 0.0
    %67 = vmatpush1.msra.mxu0 0.0
    %68 = vmatprep.subr.mxu0 0.0
    %69 = vmatpush1.msra.mxu0 0.0
    %70 = vmatprep.subr.mxu0 0.0
    %71 = vmatpush1.msra.mxu0 0.0
    %72 = vmatprep.subr.mxu0 0.0
    %73 = vmatpush1.msra.mxu0 0.0
    %74 = vmatprep.subr.mxu0 0.0
    %75 = vmatpush1.msra.mxu0 0.0
    %76 = vmatprep.subr.mxu0 0.0
    %77 = vmatpush1.msra.mxu0 0.0
    %78 = vmatprep.subr.mxu0 0.0
    %79 = vmatpush1.msra.mxu0 0.0
    %80 = vmatprep.subr.mxu0 0.0
    %81 = vmatpush1.msra.mxu0 0.0
    %82 = vmatprep.subr.mxu0 0.0
    %83 = vmatpush1.msra.mxu0 0.0
    %84 = vmatprep.subr.mxu0 0.0
    %85 = vmatpush1.msra.mxu0 0.0
    %86 = vmatprep.subr.mxu0 0.0
    %87 = vmatpush1.msra.mxu0 0.0
    %88 = vmatprep.subr.mxu0 0.0
    %89 = vmatpush1.msra.mxu0 0.0
    %90 = vmatprep.subr.mxu0 0.0
    %91 = vmatpush1.msra.mxu0 0.0
    %92 = vmatprep.subr.mxu0 0.0
    %93 = vmatpush1.msra.mxu0 0.0
    %94 = vmatprep.subr.mxu0 0.0
    %95 = vmatpush1.msra.mxu0 0.0
    %96 = vmatprep.subr.mxu0 0.0
    %97 = vmatpush1.msra.mxu0 0.0
    %98 = vmatprep.subr.mxu0 0.0
    %99 = vmatpush1.msra.mxu0 0.0
    %100 = vmatprep.subr.mxu0 0.0
    %101 = vmatpush1.msra.mxu0 0.0
    %102 = vmatprep.subr.mxu0 0.0
    %103 = vmatpush1.msra.mxu0 0.0
    %104 = vmatprep.subr.mxu0 0.0
    %105 = vmatpush1.msra.mxu0 0.0
    %106 = vmatprep.subr.mxu0 0.0
    %107 = vmatpush1.msra.mxu0 0.0
    %108 = vmatprep.subr.mxu0 0.0
    %109 = vmatpush1.msra.mxu0 0.0
    %110 = vmatprep.subr.mxu0 0.0
    %111 = vmatpush1.msra.mxu0 0.0
    %112 = vmatprep.subr.mxu0 0.0
    %113 = vmatpush1.msra.mxu0 0.0
    %114 = vmatprep.mubr.f32.mxu0 0.0
    %115 = vmatmul.mubr.f32.gmra.mrb[0].mxu0 %v48
    %v116 = vpop.f32.mrb[0].mxu0
    %v117 = vadd.f32 0.0, %v116
    %v118 = vpop.f32.mrb[0].mxu0
    %119 = vdwg.mxu0
    %120 = vrot.lane.b32.xlu0 %v41, 96
    %v121 = vpop.permute.xlu0 %120
    %v123 = vmul.f32 %v117, %v121
    %v124 = vsel %vm46, %v123, 0.0
    %125 = vadd.xlane.f32.xlu0 %v124
    %v126 = vpop.xlane.xlu0 %125
    %s127 = sld [smem:[#allocation2]]
    %v128 = vstv %s127
    %v129 = vadd.f32 %v126, %v128
    %vm130 = vcmask 7168
    %131 = vst.msk [vmem:[%s3] sm:$0xff] %vm130, %v129
    // Predicated region
    $region22: #{tpu_custom_call.1} parent=1 // pred_check
      _
    $region23: #{tpu_custom_call.1} parent=1 // pred_check_branch
      %133 = sbr.rel (0) target = $region25
    $region24: #{tpu_custom_call.1} parent=1 // pred_region
      _
    $region25: #{tpu_custom_call.1} parent=1 // pred_fallthru
      _
    // Predicated region
    $region26: #{tpu_custom_call.1} parent=1 // pred_check
      _
    $region27: #{tpu_custom_call.1} parent=1 // pred_check_branch
      %135 = sbr.rel (0) target = $region29
    $region28: #{tpu_custom_call.1} parent=1 // pred_region
      _
    $region29: #{tpu_custom_call.1} parent=1 // pred_fallthru
      _
    %136 = vsyncpa [#allocation4], 1
    %137 = vsyncpa [#allocation6], 1

</llo_original>
